<compile_context>
chip_gen: v5e
topology: v5e:2x2
jax: 0.10.0
libtpu: 0.0.40
codegen_flags: <defaults>
</compile_context>

<pallas_src>
import jax
import jax.numpy as jnp
from jax.experimental import pallas as pl
from jax.experimental.pallas import tpu as pltpu


def _round_up(n, m):
    return ((n + m - 1) // m) * m


def _mlp_kernel(x_ref,
                w1_ref, b1_ref,     # encoder Linear(F, H)
                w23_ref, b23_ref,   # folded: encoder Linear(H,H) @ head Linear(H,H)
                w4r_ref,            # head Linear(H, 1) weight as a [1, H] row
                b4_ref,             # head Linear(H, 1) bias, scalar in SMEM
                o_ref):
    x = x_ref[...]                                                     # [TB, F] f32

    # ContrastiveEncoder: Linear -> ReLU
    h = jnp.dot(x, w1_ref[...], preferred_element_type=jnp.float32) + b1_ref[...]
    h = jnp.maximum(h, 0.0)

    # (encoder Linear(H->H)) then (head Linear(H->H)): folded into one dot, then ReLU.
    h = jnp.dot(h, w23_ref[...], preferred_element_type=jnp.float32) + b23_ref[...]
    h = jnp.maximum(h, 0.0)

    # Dropout: identity in eval mode.
    # Head Linear(H -> 1): contract the last dim of both operands so the result is a
    # lane-dense [1, TB] row (batch on lanes -> unmasked stores, no relayout).
    out_row = jax.lax.dot_general(
        w4r_ref[...], h,
        dimension_numbers=(((1,), (1,)), ((), ())),
        preferred_element_type=jnp.float32,
    ) + b4_ref[0, 0]

    o_ref[...] = out_row                                               # [1, TB]


def cache_replacement_nn(x, params, *, tb=1024):
    """x: [B, F].  params: dict of (w, b) pairs, weights already [in, out]."""
    x = x.astype(jnp.float32)
    B, F = x.shape
    H = params["w1"].shape[1]

    # Offline fold of the two back-to-back H x H linears (no nonlinearity in between).
    w23 = params["w2"] @ params["w3"]                    # [H, H]
    b23 = params["b2"] @ params["w3"] + params["b3"]     # [1, H]
    w4r = params["w4"].T                                 # [1, H] lane-dense row
    b4 = params["b4"].reshape(1, 1)                      # scalar for SMEM

    # Batch tiling: TB rows per grid step (multiple of 8 sublanes); pad B up to a multiple.
    # Clamp the tile so small batches run in one unpadded step.
    tb = min(tb, _round_up(B, 8))
    Bp = _round_up(B, tb)
    nb = Bp // tb
    xp = x if Bp == B else jnp.pad(x, ((0, Bp - B), (0, 0)))

    const2 = lambda i: (0, 0)  # weights/biases: same block every step -> stay VMEM-resident

    flops = Bp * (2 * F * H + 2 * H * H + 2 * H)
    bytes_accessed = (Bp * F + F * H + H * H + 3 * H + 1 + Bp) * 4

    out_row = pl.pallas_call(
        _mlp_kernel,
        out_shape=jax.ShapeDtypeStruct((1, Bp), jnp.float32),
        grid=(nb,),
        in_specs=[
            pl.BlockSpec((tb, F), lambda i: (i, 0)),                  # x tiles (streamed)
            pl.BlockSpec((F, H), const2),                             # w1  (resident)
            pl.BlockSpec((1, H), const2),                             # b1
            pl.BlockSpec((H, H), const2),                             # w23
            pl.BlockSpec((1, H), const2),                             # b23
            pl.BlockSpec((1, H), const2),                             # w4 row
            pl.BlockSpec(memory_space=pltpu.MemorySpace.SMEM),        # b4 scalar
        ],
        out_specs=pl.BlockSpec((1, tb), lambda i: (0, i)),            # lane-dense output
        compiler_params=pltpu.CompilerParams(
            dimension_semantics=("parallel",),      # v7x: shard batch tiles over both TCs
            vmem_limit_bytes=32 * 1024 * 1024,      # explicit budget (safe on v5e/v6e/v7x)
        ),
        cost_estimate=pl.CostEstimate(
            flops=flops, transcendentals=0, bytes_accessed=bytes_accessed),
    )(xp, params["w1"], params["b1"], w23, b23, w4r, b4)

    # (1, Bp) lane-dense slab -> (B, 1) column (wrapper-side layout plumbing only).
    return out_row.reshape(Bp)[:B].reshape(B, 1)


# ---------------------------- init + reference ---------------------------------------


def _xavier_uniform(key, fan_in, fan_out):
    # matches nn.init.xavier_uniform_ (gain=1) for a [out, in] torch weight; built as [in, out].
    limit = (6.0 / (fan_in + fan_out)) ** 0.5
    return jax.random.uniform(key, (fan_in, fan_out), jnp.float32, -limit, limit)


def _kaiming_uniform_linear(key, fan_in, fan_out):
    # PyTorch default nn.Linear init (kaiming_uniform, a=sqrt(5)) -> U(-1/sqrt(fan_in), ...).
    limit = 1.0 / (fan_in ** 0.5)
    return jax.random.uniform(key, (fan_in, fan_out), jnp.float32, -limit, limit)


def init_params(key, num_features, hidden_dim):
    ks = jax.random.split(key, 8)
    F, H = num_features, hidden_dim
    return {
        # ContrastiveEncoder linears: PyTorch default init
        "w1": _kaiming_uniform_linear(ks[0], F, H),
        "b1": jax.random.uniform(ks[1], (1, H), jnp.float32,
                                 -1.0 / (F ** 0.5), 1.0 / (F ** 0.5)),
        "w2": _kaiming_uniform_linear(ks[2], H, H),
        "b2": jax.random.uniform(ks[3], (1, H), jnp.float32,
                                 -1.0 / (H ** 0.5), 1.0 / (H ** 0.5)),
        # Outer Linear layers: xavier_uniform_ weights, default bias init
        "w3": _xavier_uniform(ks[4], H, H),
        "b3": jax.random.uniform(ks[5], (1, H), jnp.float32,
                                 -1.0 / (H ** 0.5), 1.0 / (H ** 0.5)),
        "w4": _xavier_uniform(ks[6], H, 1),
        "b4": jax.random.uniform(ks[7], (1, 1), jnp.float32,
                                 -1.0 / (H ** 0.5), 1.0 / (H ** 0.5)),
    }


def _reference(x, p):
    # Unfolded reference (also validates the exactness of the w2@w3 folding).
    h = jnp.maximum(x @ p["w1"] + p["b1"], 0.0)
    h = h @ p["w2"] + p["b2"]
    h = jnp.maximum(h @ p["w3"] + p["b3"], 0.0)
    return h @ p["w4"] + p["b4"]


if __name__ == "__main__":
    # Small shapes; batch deliberately not a multiple of the tile used below so both the
    # padding path and the multi-step grid are exercised.
    B, F, H = 600, 16, 32
    key = jax.random.PRNGKey(0)
    kx, kp = jax.random.split(key)
    x = jax.random.normal(kx, (B, F), jnp.float32)
    params = init_params(kp, F, H)

    # Single-step path (tile clamps to round_up(B,8) -> no padding).
    fwd = jax.jit(lambda xx: cache_replacement_nn(xx, params))
    out = jax.block_until_ready(fwd(x))

    # Multi-step path (2 grid steps + padded tail) to exercise the streaming pipeline.
    fwd_tiled = jax.jit(lambda xx: cache_replacement_nn(xx, params, tb=512))
    out_tiled = jax.block_until_ready(fwd_tiled(x))

    ref = _reference(x, params)
    assert out.shape == (B, 1), out.shape
    assert jnp.allclose(out, ref, atol=1e-4, rtol=1e-4), "mismatch vs reference"
    assert jnp.allclose(out_tiled, ref, atol=1e-4, rtol=1e-4), "tiled mismatch vs reference"
    print("KERNEL_OK")
</pallas_src>

<mosaic_0001>
module attributes {stable_mosaic.version = 11 : i64} {
  func.func @_mlp_kernel(%arg0: i32, %arg1: memref<600x16xf32, #tpu.memory_space<vmem>>, %arg2: memref<16x32xf32, #tpu.memory_space<vmem>>, %arg3: memref<1x32xf32, #tpu.memory_space<vmem>>, %arg4: memref<32x32xf32, #tpu.memory_space<vmem>>, %arg5: memref<1x32xf32, #tpu.memory_space<vmem>>, %arg6: memref<1x32xf32, #tpu.memory_space<vmem>>, %arg7: memref<1x1xf32, #tpu.memory_space<smem>>, %arg8: memref<1x600xf32, #tpu.memory_space<vmem>>) attributes {dimension_semantics = [#tpu.dimension_semantics<parallel>], iteration_bounds = array<i64: 1>, scalar_prefetch = 0 : i64, scratch_operands = 0 : i64, tpu.core_type = #tpu.core_type<tc>, window_params = [{transform_indices = @transform_0, window_bounds = array<i64: 600, 16>}, {pipeline_mode = #tpu.pipeline_mode<synchronous>, transform_indices = @transform_1, window_bounds = array<i64: 16, 32>}, {pipeline_mode = #tpu.pipeline_mode<synchronous>, transform_indices = @transform_2, window_bounds = array<i64: 1, 32>}, {pipeline_mode = #tpu.pipeline_mode<synchronous>, transform_indices = @transform_3, window_bounds = array<i64: 32, 32>}, {pipeline_mode = #tpu.pipeline_mode<synchronous>, transform_indices = @transform_4, window_bounds = array<i64: 1, 32>}, {pipeline_mode = #tpu.pipeline_mode<synchronous>, transform_indices = @transform_5, window_bounds = array<i64: 1, 32>}, {transform_indices = @transform_6, window_bounds = array<i64: 1, 1>}, {transform_indices = @transform_7, window_bounds = array<i64: 1, 600>}]} {
    %c0 = arith.constant 0 : index
    %c0_0 = arith.constant 0 : index
    %0 = vector.load %arg1[%c0, %c0_0] : memref<600x16xf32, #tpu.memory_space<vmem>>, vector<600x16xf32>
    %c0_1 = arith.constant 0 : index
    %c0_2 = arith.constant 0 : index
    %1 = vector.load %arg2[%c0_1, %c0_2] : memref<16x32xf32, #tpu.memory_space<vmem>>, vector<16x32xf32>
    %cst = arith.constant dense<0.000000e+00> : vector<600x32xf32>
    %2 = tpu.matmul %0, %1, %cst {dimension_numbers = #tpu.dot_dimension_numbers<[1], [0], [0], [1], [0, 0, 1, 1], [], []>} : vector<600x16xf32>, vector<16x32xf32>, vector<600x32xf32> -> vector<600x32xf32>
    %c0_3 = arith.constant 0 : index
    %c0_4 = arith.constant 0 : index
    %3 = vector.load %arg3[%c0_3, %c0_4] : memref<1x32xf32, #tpu.memory_space<vmem>>, vector<1x32xf32>
    %4 = vector.broadcast %3 : vector<1x32xf32> to vector<600x32xf32>
    %5 = arith.addf %2, %4 : vector<600x32xf32>
    %cst_5 = arith.constant 0.000000e+00 : f32
    %6 = vector.broadcast %cst_5 : f32 to vector<600x32xf32>
    %7 = arith.maximumf %5, %6 : vector<600x32xf32>
    %c0_6 = arith.constant 0 : index
    %c0_7 = arith.constant 0 : index
    %8 = vector.load %arg4[%c0_6, %c0_7] : memref<32x32xf32, #tpu.memory_space<vmem>>, vector<32x32xf32>
    %cst_8 = arith.constant dense<0.000000e+00> : vector<600x32xf32>
    %9 = tpu.matmul %7, %8, %cst_8 {dimension_numbers = #tpu.dot_dimension_numbers<[1], [0], [0], [1], [0, 0, 1, 1], [], []>} : vector<600x32xf32>, vector<32x32xf32>, vector<600x32xf32> -> vector<600x32xf32>
    %c0_9 = arith.constant 0 : index
    %c0_10 = arith.constant 0 : index
    %10 = vector.load %arg5[%c0_9, %c0_10] : memref<1x32xf32, #tpu.memory_space<vmem>>, vector<1x32xf32>
    %11 = vector.broadcast %10 : vector<1x32xf32> to vector<600x32xf32>
    %12 = arith.addf %9, %11 : vector<600x32xf32>
    %cst_11 = arith.constant 0.000000e+00 : f32
    %13 = vector.broadcast %cst_11 : f32 to vector<600x32xf32>
    %14 = arith.maximumf %12, %13 : vector<600x32xf32>
    %c0_12 = arith.constant 0 : index
    %c0_13 = arith.constant 0 : index
    %15 = vector.load %arg6[%c0_12, %c0_13] : memref<1x32xf32, #tpu.memory_space<vmem>>, vector<1x32xf32>
    %cst_14 = arith.constant dense<0.000000e+00> : vector<1x600xf32>
    %16 = tpu.matmul %15, %14, %cst_14 {dimension_numbers = #tpu.dot_dimension_numbers<[1], [1], [0], [0], [0, 0, 1, 0], [], []>} : vector<1x32xf32>, vector<600x32xf32>, vector<1x600xf32> -> vector<1x600xf32>
    %c0_15 = arith.constant 0 : index
    %c0_16 = arith.constant 0 : index
    %17 = memref.load %arg7[%c0_15, %c0_16] : memref<1x1xf32, #tpu.memory_space<smem>>
    %18 = vector.broadcast %17 : f32 to vector<1x600xf32>
    %19 = arith.addf %16, %18 : vector<1x600xf32>
    %c0_17 = arith.constant 0 : index
    %c0_18 = arith.constant 0 : index
    %20 = vector.load %arg8[%c0_17, %c0_18] : memref<1x600xf32, #tpu.memory_space<vmem>>, vector<1x600xf32>
    tpu.vector_store %arg8[%c0_17, %c0_18], %19 {strides = array<i32>} : memref<1x600xf32, #tpu.memory_space<vmem>>, vector<1x600xf32>,
    return
  }
  func.func @transform_0(%arg0: i32) -> (i32, i32) {
    %c0_i32 = arith.constant 0 : i32
    %c0_i32_0 = arith.constant 0 : i32
    return %arg0, %c0_i32 : i32, i32
  }
  func.func @transform_1(%arg0: i32) -> (i32, i32) {
    %c0_i32 = arith.constant 0 : i32
    %c0_i32_0 = arith.constant 0 : i32
    %c0_i32_1 = arith.constant 0 : i32
    return %c0_i32, %c0_i32_0 : i32, i32
  }
  func.func @transform_2(%arg0: i32) -> (i32, i32) {
    %c0_i32 = arith.constant 0 : i32
    %c0_i32_0 = arith.constant 0 : i32
    %c0_i32_1 = arith.constant 0 : i32
    return %c0_i32, %c0_i32_0 : i32, i32
  }
  func.func @transform_3(%arg0: i32) -> (i32, i32) {
    %c0_i32 = arith.constant 0 : i32
    %c0_i32_0 = arith.constant 0 : i32
    %c0_i32_1 = arith.constant 0 : i32
    return %c0_i32, %c0_i32_0 : i32, i32
  }
  func.func @transform_4(%arg0: i32) -> (i32, i32) {
    %c0_i32 = arith.constant 0 : i32
    %c0_i32_0 = arith.constant 0 : i32
    %c0_i32_1 = arith.constant 0 : i32
    return %c0_i32, %c0_i32_0 : i32, i32
  }
  func.func @transform_5(%arg0: i32) -> (i32, i32) {
    %c0_i32 = arith.constant 0 : i32
    %c0_i32_0 = arith.constant 0 : i32
    %c0_i32_1 = arith.constant 0 : i32
    return %c0_i32, %c0_i32_0 : i32, i32
  }
  func.func @transform_6(%arg0: i32) -> (i32, i32) {
    %c0_i32 = arith.constant 0 : i32
    %c0_i32_0 = arith.constant 0 : i32
    %c0_i32_1 = arith.constant 0 : i32
    return %c0_i32, %c0_i32_0 : i32, i32
  }
  func.func @transform_7(%arg0: i32) -> (i32, i32) {
    %c0_i32 = arith.constant 0 : i32
    %c0_i32_0 = arith.constant 0 : i32
    return %c0_i32, %arg0 : i32, i32
  }
}

</mosaic_0001>

<llo_original>
// kernel: _lambda_.1
$region0: #{_lambda_.1}
  #allocation0 [shape = 'u32[]', space=smem, size = 0x4, offset = 0x4, fixed_abs, tag = 'smem constant byte address 0x4 - core index']
  #allocation1 [shape = 'u32[72,128]{1,0:T(1,128)}', space=vmem, size = 0x9000, scoped, tag = 'internal scratch']
  #allocation2 [shape = 'f32[1,1]{1,0:T(1,128)S(6)}', space=smem, size = 0x200, scoped, tag = 'scoped memory for _lambda_.1']
  %s0 = inlined_call_operand.vmem [shape: f32[600,16], index: 0, kind: input, shape index: {}]
  %s1 = inlined_call_operand.vmem [shape: f32[16,32], index: 1, kind: input, shape index: {}]
  %s2 = inlined_call_operand.vmem [shape: f32[1,32], index: 2, kind: input, shape index: {}]
  %s3 = inlined_call_operand.vmem [shape: f32[32,32], index: 3, kind: input, shape index: {}]
  %s4 = inlined_call_operand.vmem [shape: f32[1,32], index: 4, kind: input, shape index: {}]
  %s5 = inlined_call_operand.vmem [shape: f32[1,32], index: 5, kind: input, shape index: {}]
  %s6 = inlined_call_operand.<no memory space> [shape: f32[1,1], index: 6, kind: input, shape index: {}]
  %s7 = inlined_call_operand.hbm [shape: f32[1,600], index: 7, kind: output, shape index: {}]
  %s8 = sld [smem:[#allocation0]]
  $region38: #{_lambda_.1} parent=0
    _
  %s10 = ssub.s32 1, %s8
  %s11 = scalar_select 0, %s10, %s8
  %12 = sst [smem:[#allocation2]] %s6
  $region1: #{_lambda_.1} parent=0
    #allocation3 [shape = 'u8[2560]{0}', space=vmem, size = 0xc00, scoped, tag = 'output window, operand 0, single buffered']
    #allocation4 [shape = 's32[1]{0}', space=sflag, size = 0x4, scoped, tag = 'scoped memory for _lambda_.1']
    %13 = vsyncpa [#allocation4], 0
    // Predicated region
    $region2: #{_lambda_.1} parent=1 // pred_check
      _
    $region3: #{_lambda_.1} parent=1 // pred_check_branch
      %15 = sbr.rel (0) target = $region5
    $region4: #{_lambda_.1} parent=1 // pred_region
      _
    $region5: #{_lambda_.1} parent=1 // pred_fallthru
      _
    // Predicated region
    $region6: #{_lambda_.1} parent=1 // pred_check
      _
    $region7: #{_lambda_.1} parent=1 // pred_check_branch
      %17 = sbr.rel (0) target = $region9
    $region8: #{_lambda_.1} parent=1 // pred_region
      _
    $region9: #{_lambda_.1} parent=1 // pred_fallthru
      _
    // Predicated region
    $region10: #{_lambda_.1} parent=1 // pred_check
      _
    $region11: #{_lambda_.1} parent=1 // pred_check_branch
      %19 = sbr.rel (0) target = $region13
    $region12: #{_lambda_.1} parent=1 // pred_region
      _
    $region13: #{_lambda_.1} parent=1 // pred_fallthru
      _
    // Predicated region
    $region14: #{_lambda_.1} parent=1 // pred_check
      _
    $region15: #{_lambda_.1} parent=1 // pred_check_branch
      %21 = sbr.rel (0) target = $region17
    $region16: #{_lambda_.1} parent=1 // pred_region
      _
    $region17: #{_lambda_.1} parent=1 // pred_fallthru
      _
    // Predicated region
    $region18: #{_lambda_.1} parent=1 // pred_check
      _
    $region19: #{_lambda_.1} parent=1 // pred_check_branch
      %23 = sbr.rel (0) target = $region21
    $region20: #{_lambda_.1} parent=1 // pred_region
      _
    $region21: #{_lambda_.1} parent=1 // pred_fallthru
      _
    // Predicated region
    $region22: #{_lambda_.1} parent=1 // pred_check
      _
    $region23: #{_lambda_.1} parent=1 // pred_check_branch
      %25 = sbr.rel (0) target = $region25
    $region24: #{_lambda_.1} parent=1 // pred_region
      _
    $region25: #{_lambda_.1} parent=1 // pred_fallthru
      _
    // Predicated region
    $region26: #{_lambda_.1} parent=1 // pred_check
      _
    $region27: #{_lambda_.1} parent=1 // pred_check_branch
      %27 = sbr.rel (0) target = $region29
    $region28: #{_lambda_.1} parent=1 // pred_region
      _
    $region29: #{_lambda_.1} parent=1 // pred_fallthru
      _
    %v28 = vld [vmem:[%s0] sm:$0xff]
    %v29 = vld [vmem:[%s0 + $0x8] sm:$0xff]
    %v30 = vld [vmem:[%s0 + $0x10] sm:$0xff]
    %v31 = vld [vmem:[%s0 + $0x18] sm:$0xff]
    %v32 = vld [vmem:[%s0 + $0x20] sm:$0xff]
    %v33 = vld [vmem:[%s0 + $0x28] sm:$0xff]
    %v34 = vld [vmem:[%s0 + $0x30] sm:$0xff]
    %v35 = vld [vmem:[%s0 + $0x38] sm:$0xff]
    %v36 = vld [vmem:[%s0 + $0x40] sm:$0xff]
    %v37 = vld [vmem:[%s0 + $0x48] sm:$0xff]
    %v38 = vld [vmem:[%s0 + $0x50] sm:$0xff]
    %v39 = vld [vmem:[%s0 + $0x58] sm:$0xff]
    %v40 = vld [vmem:[%s0 + $0x60] sm:$0xff]
    %v41 = vld [vmem:[%s0 + $0x68] sm:$0xff]
    %v42 = vld [vmem:[%s0 + $0x70] sm:$0xff]
    %v43 = vld [vmem:[%s0 + $0x78] sm:$0xff]
    %v44 = vld [vmem:[%s0 + $0x80] sm:$0xff]
    %v45 = vld [vmem:[%s0 + $0x88] sm:$0xff]
    %v46 = vld [vmem:[%s0 + $0x90] sm:$0xff]
    %v47 = vld [vmem:[%s0 + $0x98] sm:$0xff]
    %v48 = vld [vmem:[%s0 + $0xa0] sm:$0xff]
    %v49 = vld [vmem:[%s0 + $0xa8] sm:$0xff]
    %v50 = vld [vmem:[%s0 + $0xb0] sm:$0xff]
    %v51 = vld [vmem:[%s0 + $0xb8] sm:$0xff]
    %v52 = vld [vmem:[%s0 + $0xc0] sm:$0xff]
    %v53 = vld [vmem:[%s0 + $0xc8] sm:$0xff]
    %v54 = vld [vmem:[%s0 + $0xd0] sm:$0xff]
    %v55 = vld [vmem:[%s0 + $0xd8] sm:$0xff]
    %v56 = vld [vmem:[%s0 + $0xe0] sm:$0xff]
    %v57 = vld [vmem:[%s0 + $0xe8] sm:$0xff]
    %v58 = vld [vmem:[%s0 + $0xf0] sm:$0xff]
    %v59 = vld [vmem:[%s0 + $0xf8] sm:$0xff]
    %v60 = vld [vmem:[%s0 + $0x100] sm:$0xff]
    %v61 = vld [vmem:[%s0 + $0x108] sm:$0xff]
    %v62 = vld [vmem:[%s0 + $0x110] sm:$0xff]
    %v63 = vld [vmem:[%s0 + $0x118] sm:$0xff]
    %v64 = vld [vmem:[%s0 + $0x120] sm:$0xff]
    %v65 = vld [vmem:[%s0 + $0x128] sm:$0xff]
    %v66 = vld [vmem:[%s0 + $0x130] sm:$0xff]
    %v67 = vld [vmem:[%s0 + $0x138] sm:$0xff]
    %v68 = vld [vmem:[%s0 + $0x140] sm:$0xff]
    %v69 = vld [vmem:[%s0 + $0x148] sm:$0xff]
    %v70 = vld [vmem:[%s0 + $0x150] sm:$0xff]
    %v71 = vld [vmem:[%s0 + $0x158] sm:$0xff]
    %v72 = vld [vmem:[%s0 + $0x160] sm:$0xff]
    %v73 = vld [vmem:[%s0 + $0x168] sm:$0xff]
    %v74 = vld [vmem:[%s0 + $0x170] sm:$0xff]
    %v75 = vld [vmem:[%s0 + $0x178] sm:$0xff]
    %v76 = vld [vmem:[%s0 + $0x180] sm:$0xff]
    %v77 = vld [vmem:[%s0 + $0x188] sm:$0xff]
    %v78 = vld [vmem:[%s0 + $0x190] sm:$0xff]
    %v79 = vld [vmem:[%s0 + $0x198] sm:$0xff]
    %v80 = vld [vmem:[%s0 + $0x1a0] sm:$0xff]
    %v81 = vld [vmem:[%s0 + $0x1a8] sm:$0xff]
    %v82 = vld [vmem:[%s0 + $0x1b0] sm:$0xff]
    %v83 = vld [vmem:[%s0 + $0x1b8] sm:$0xff]
    %v84 = vld [vmem:[%s0 + $0x1c0] sm:$0xff]
    %v85 = vld [vmem:[%s0 + $0x1c8] sm:$0xff]
    %v86 = vld [vmem:[%s0 + $0x1d0] sm:$0xff]
    %v87 = vld [vmem:[%s0 + $0x1d8] sm:$0xff]
    %v88 = vld [vmem:[%s0 + $0x1e0] sm:$0xff]
    %v89 = vld [vmem:[%s0 + $0x1e8] sm:$0xff]
    %v90 = vld [vmem:[%s0 + $0x1f0] sm:$0xff]
    %v91 = vld [vmem:[%s0 + $0x1f8] sm:$0xff]
    %v92 = vld [vmem:[%s0 + $0x200] sm:$0xff]
    %v93 = vld [vmem:[%s0 + $0x208] sm:$0xff]
    %v94 = vld [vmem:[%s0 + $0x210] sm:$0xff]
    %v95 = vld [vmem:[%s0 + $0x218] sm:$0xff]
    %v96 = vld [vmem:[%s0 + $0x220] sm:$0xff]
    %v97 = vld [vmem:[%s0 + $0x228] sm:$0xff]
    %v98 = vld [vmem:[%s0 + $0x230] sm:$0xff]
    %v99 = vld [vmem:[%s0 + $0x238] sm:$0xff]
    %v100 = vld [vmem:[%s0 + $0x240] sm:$0xff]
    %v101 = vld [vmem:[%s0 + $0x248] sm:$0xff]
    %v102 = vld [vmem:[%s0 + $0x250] sm:$0xff]
    %v103 = vld [vmem:[%s1] sm:$0xff]
    %v104 = vld [vmem:[%s1 + $0x8] sm:$0xff]
    %v105 = vld [vmem:[%s2] sm:$0x1]
    %v107 = vperm.slane %v105, 0
    %vm109 = vcmask 130048
    %v111 = vsel %vm109, %v28, 0
    %v114 = vsel %vm109, %v29, 0
    %v117 = vsel %vm109, %v30, 0
    %v120 = vsel %vm109, %v31, 0
    %v123 = vsel %vm109, %v32, 0
    %v126 = vsel %vm109, %v33, 0
    %v129 = vsel %vm109, %v34, 0
    %v132 = vsel %vm109, %v35, 0
    %v135 = vsel %vm109, %v36, 0
    %v138 = vsel %vm109, %v37, 0
    %v141 = vsel %vm109, %v38, 0
    %v144 = vsel %vm109, %v39, 0
    %v147 = vsel %vm109, %v40, 0
    %v150 = vsel %vm109, %v41, 0
    %v153 = vsel %vm109, %v42, 0
    %v156 = vsel %vm109, %v43, 0
    %v159 = vsel %vm109, %v44, 0
    %v162 = vsel %vm109, %v45, 0
    %v165 = vsel %vm109, %v46, 0
    %v168 = vsel %vm109, %v47, 0
    %v171 = vsel %vm109, %v48, 0
    %v174 = vsel %vm109, %v49, 0
    %v177 = vsel %vm109, %v50, 0
    %v180 = vsel %vm109, %v51, 0
    %v183 = vsel %vm109, %v52, 0
    %v186 = vsel %vm109, %v53, 0
    %v189 = vsel %vm109, %v54, 0
    %v192 = vsel %vm109, %v55, 0
    %v195 = vsel %vm109, %v56, 0
    %v198 = vsel %vm109, %v57, 0
    %v201 = vsel %vm109, %v58, 0
    %v204 = vsel %vm109, %v59, 0
    %v207 = vsel %vm109, %v60, 0
    %v210 = vsel %vm109, %v61, 0
    %v213 = vsel %vm109, %v62, 0
    %v216 = vsel %vm109, %v63, 0
    %v219 = vsel %vm109, %v64, 0
    %v222 = vsel %vm109, %v65, 0
    %v225 = vsel %vm109, %v66, 0
    %v228 = vsel %vm109, %v67, 0
    %v231 = vsel %vm109, %v68, 0
    %v234 = vsel %vm109, %v69, 0
    %v237 = vsel %vm109, %v70, 0
    %v240 = vsel %vm109, %v71, 0
    %v243 = vsel %vm109, %v72, 0
    %v246 = vsel %vm109, %v73, 0
    %v249 = vsel %vm109, %v74, 0
    %v252 = vsel %vm109, %v75, 0
    %v255 = vsel %vm109, %v76, 0
    %v258 = vsel %vm109, %v77, 0
    %v261 = vsel %vm109, %v78, 0
    %v264 = vsel %vm109, %v79, 0
    %v267 = vsel %vm109, %v80, 0
    %v270 = vsel %vm109, %v81, 0
    %v273 = vsel %vm109, %v82, 0
    %v276 = vsel %vm109, %v83, 0
    %v279 = vsel %vm109, %v84, 0
    %v282 = vsel %vm109, %v85, 0
    %v285 = vsel %vm109, %v86, 0
    %v288 = vsel %vm109, %v87, 0
    %v291 = vsel %vm109, %v88, 0
    %v294 = vsel %vm109, %v89, 0
    %v297 = vsel %vm109, %v90, 0
    %v300 = vsel %vm109, %v91, 0
    %v303 = vsel %vm109, %v92, 0
    %v306 = vsel %vm109, %v93, 0
    %v309 = vsel %vm109, %v94, 0
    %v312 = vsel %vm109, %v95, 0
    %v315 = vsel %vm109, %v96, 0
    %v318 = vsel %vm109, %v97, 0
    %v321 = vsel %vm109, %v98, 0
    %v324 = vsel %vm109, %v99, 0
    %v327 = vsel %vm109, %v100, 0
    %v330 = vsel %vm109, %v101, 0
    %v333 = vsel %vm109, %v102, 0
    %335 = vmatpush.msra.mxu0 0.0
    %336 = vmatpush.msra.mxu0 0.0
    %337 = vmatpush.msra.mxu0 0.0
    %338 = vmatpush.msra.mxu0 0.0
    %339 = vmatpush.msra.mxu0 0.0
    %340 = vmatpush.msra.mxu0 0.0
    %341 = vmatpush.msra.mxu0 0.0
    %342 = vmatpush.msra.mxu0 0.0
    %343 = vmatpush.msra.mxu0 0.0
    %344 = vmatpush.msra.mxu0 0.0
    %345 = vmatpush.msra.mxu0 0.0
    %346 = vmatpush.msra.mxu0 0.0
    %347 = vmatpush.msra.mxu0 0.0
    %348 = vmatpush.msra.mxu0 0.0
    %349 = vmatpush.msra.mxu0 %v104
    %350 = vmatpush.msra.mxu0 %v103
    %351 = vmatmul.f32.gmra.mxu0 %v111
    %v352 = vpop.f32.mrf.mxu0
    %v353 = vadd.f32 %v107, %v352
    %354 = vmatmul.f32.gmra.mxu0 %v114
    %v355 = vpop.f32.mrf.mxu0
    %v356 = vadd.f32 %v107, %v355
    %357 = vmatmul.f32.gmra.mxu0 %v117
    %v358 = vpop.f32.mrf.mxu0
    %v359 = vadd.f32 %v107, %v358
    %360 = vmatmul.f32.gmra.mxu0 %v120
    %v361 = vpop.f32.mrf.mxu0
    %v362 = vadd.f32 %v107, %v361
    %363 = vmatmul.f32.gmra.mxu0 %v123
    %v364 = vpop.f32.mrf.mxu0
    %v365 = vadd.f32 %v107, %v364
    %366 = vmatmul.f32.gmra.mxu0 %v126
    %v367 = vpop.f32.mrf.mxu0
    %v368 = vadd.f32 %v107, %v367
    %369 = vmatmul.f32.gmra.mxu0 %v129
    %v370 = vpop.f32.mrf.mxu0
    %v371 = vadd.f32 %v107, %v370
    %372 = vmatmul.f32.gmra.mxu0 %v132
    %v373 = vpop.f32.mrf.mxu0
    %v374 = vadd.f32 %v107, %v373
    %375 = vmatmul.f32.gmra.mxu0 %v135
    %v376 = vpop.f32.mrf.mxu0
    %v377 = vadd.f32 %v107, %v376
    %378 = vmatmul.f32.gmra.mxu0 %v138
    %v379 = vpop.f32.mrf.mxu0
    %v380 = vadd.f32 %v107, %v379
    %381 = vmatmul.f32.gmra.mxu0 %v141
    %v382 = vpop.f32.mrf.mxu0
    %v383 = vadd.f32 %v107, %v382
    %384 = vmatmul.f32.gmra.mxu0 %v144
    %v385 = vpop.f32.mrf.mxu0
    %v386 = vadd.f32 %v107, %v385
    %387 = vmatmul.f32.gmra.mxu0 %v147
    %v388 = vpop.f32.mrf.mxu0
    %v389 = vadd.f32 %v107, %v388
    %390 = vmatmul.f32.gmra.mxu0 %v150
    %v391 = vpop.f32.mrf.mxu0
    %v392 = vadd.f32 %v107, %v391
    %393 = vmatmul.f32.gmra.mxu0 %v153
    %v394 = vpop.f32.mrf.mxu0
    %v395 = vadd.f32 %v107, %v394
    %396 = vmatmul.f32.gmra.mxu0 %v156
    %v397 = vpop.f32.mrf.mxu0
    %v398 = vadd.f32 %v107, %v397
    %399 = vmatmul.f32.gmra.mxu0 %v159
    %v400 = vpop.f32.mrf.mxu0
    %v401 = vadd.f32 %v107, %v400
    %402 = vmatmul.f32.gmra.mxu0 %v162
    %v403 = vpop.f32.mrf.mxu0
    %v404 = vadd.f32 %v107, %v403
    %405 = vmatmul.f32.gmra.mxu0 %v165
    %v406 = vpop.f32.mrf.mxu0
    %v407 = vadd.f32 %v107, %v406
    %408 = vmatmul.f32.gmra.mxu0 %v168
    %v409 = vpop.f32.mrf.mxu0
    %v410 = vadd.f32 %v107, %v409
    %411 = vmatmul.f32.gmra.mxu0 %v171
    %v412 = vpop.f32.mrf.mxu0
    %v413 = vadd.f32 %v107, %v412
    %414 = vmatmul.f32.gmra.mxu0 %v174
    %v415 = vpop.f32.mrf.mxu0
    %v416 = vadd.f32 %v107, %v415
    %417 = vmatmul.f32.gmra.mxu0 %v177
    %v418 = vpop.f32.mrf.mxu0
    %v419 = vadd.f32 %v107, %v418
    %420 = vmatmul.f32.gmra.mxu0 %v180
    %v421 = vpop.f32.mrf.mxu0
    %v422 = vadd.f32 %v107, %v421
    %423 = vmatmul.f32.gmra.mxu0 %v183
    %v424 = vpop.f32.mrf.mxu0
    %v425 = vadd.f32 %v107, %v424
    %426 = vmatmul.f32.gmra.mxu0 %v186
    %v427 = vpop.f32.mrf.mxu0
    %v428 = vadd.f32 %v107, %v427
    %429 = vmatmul.f32.gmra.mxu0 %v189
    %v430 = vpop.f32.mrf.mxu0
    %v431 = vadd.f32 %v107, %v430
    %432 = vmatmul.f32.gmra.mxu0 %v192
    %v433 = vpop.f32.mrf.mxu0
    %v434 = vadd.f32 %v107, %v433
    %435 = vmatmul.f32.gmra.mxu0 %v195
    %v436 = vpop.f32.mrf.mxu0
    %v437 = vadd.f32 %v107, %v436
    %438 = vmatmul.f32.gmra.mxu0 %v198
    %v439 = vpop.f32.mrf.mxu0
    %v440 = vadd.f32 %v107, %v439
    %441 = vmatmul.f32.gmra.mxu0 %v201
    %v442 = vpop.f32.mrf.mxu0
    %v443 = vadd.f32 %v107, %v442
    %444 = vmatmul.f32.gmra.mxu0 %v204
    %v445 = vpop.f32.mrf.mxu0
    %v446 = vadd.f32 %v107, %v445
    %447 = vmatmul.f32.gmra.mxu0 %v207
    %v448 = vpop.f32.mrf.mxu0
    %v449 = vadd.f32 %v107, %v448
    %450 = vmatmul.f32.gmra.mxu0 %v210
    %v451 = vpop.f32.mrf.mxu0
    %v452 = vadd.f32 %v107, %v451
    %453 = vmatmul.f32.gmra.mxu0 %v213
    %v454 = vpop.f32.mrf.mxu0
    %v455 = vadd.f32 %v107, %v454
    %456 = vmatmul.f32.gmra.mxu0 %v216
    %v457 = vpop.f32.mrf.mxu0
    %v458 = vadd.f32 %v107, %v457
    %459 = vmatmul.f32.gmra.mxu0 %v219
    %v460 = vpop.f32.mrf.mxu0
    %v461 = vadd.f32 %v107, %v460
    %462 = vmatmul.f32.gmra.mxu0 %v222
    %v463 = vpop.f32.mrf.mxu0
    %v464 = vadd.f32 %v107, %v463
    %465 = vmatmul.f32.gmra.mxu0 %v225
    %v466 = vpop.f32.mrf.mxu0
    %v467 = vadd.f32 %v107, %v466
    %468 = vmatmul.f32.gmra.mxu0 %v228
    %v469 = vpop.f32.mrf.mxu0
    %v470 = vadd.f32 %v107, %v469
    %471 = vmatmul.f32.gmra.mxu0 %v231
    %v472 = vpop.f32.mrf.mxu0
    %v473 = vadd.f32 %v107, %v472
    %474 = vmatmul.f32.gmra.mxu0 %v234
    %v475 = vpop.f32.mrf.mxu0
    %v476 = vadd.f32 %v107, %v475
    %477 = vmatmul.f32.gmra.mxu0 %v237
    %v478 = vpop.f32.mrf.mxu0
    %v479 = vadd.f32 %v107, %v478
    %480 = vmatmul.f32.gmra.mxu0 %v240
    %v481 = vpop.f32.mrf.mxu0
    %v482 = vadd.f32 %v107, %v481
    %483 = vmatmul.f32.gmra.mxu0 %v243
    %v484 = vpop.f32.mrf.mxu0
    %v485 = vadd.f32 %v107, %v484
    %486 = vmatmul.f32.gmra.mxu0 %v246
    %v487 = vpop.f32.mrf.mxu0
    %v488 = vadd.f32 %v107, %v487
    %489 = vmatmul.f32.gmra.mxu0 %v249
    %v490 = vpop.f32.mrf.mxu0
    %v491 = vadd.f32 %v107, %v490
    %492 = vmatmul.f32.gmra.mxu0 %v252
    %v493 = vpop.f32.mrf.mxu0
    %v494 = vadd.f32 %v107, %v493
    %495 = vmatmul.f32.gmra.mxu0 %v255
    %v496 = vpop.f32.mrf.mxu0
    %v497 = vadd.f32 %v107, %v496
    %498 = vmatmul.f32.gmra.mxu0 %v258
    %v499 = vpop.f32.mrf.mxu0
    %v500 = vadd.f32 %v107, %v499
    %501 = vmatmul.f32.gmra.mxu0 %v261
    %v502 = vpop.f32.mrf.mxu0
    %v503 = vadd.f32 %v107, %v502
    %504 = vmatmul.f32.gmra.mxu0 %v264
    %v505 = vpop.f32.mrf.mxu0
    %v506 = vadd.f32 %v107, %v505
    %507 = vmatmul.f32.gmra.mxu0 %v267
    %v508 = vpop.f32.mrf.mxu0
    %v509 = vadd.f32 %v107, %v508
    %510 = vmatmul.f32.gmra.mxu0 %v270
    %v511 = vpop.f32.mrf.mxu0
    %v512 = vadd.f32 %v107, %v511
    %513 = vmatmul.f32.gmra.mxu0 %v273
    %v514 = vpop.f32.mrf.mxu0
    %v515 = vadd.f32 %v107, %v514
    %516 = vmatmul.f32.gmra.mxu0 %v276
    %v517 = vpop.f32.mrf.mxu0
    %v518 = vadd.f32 %v107, %v517
    %519 = vmatmul.f32.gmra.mxu0 %v279
    %v520 = vpop.f32.mrf.mxu0
    %v521 = vadd.f32 %v107, %v520
    %522 = vmatmul.f32.gmra.mxu0 %v282
    %v523 = vpop.f32.mrf.mxu0
    %v524 = vadd.f32 %v107, %v523
    %525 = vmatmul.f32.gmra.mxu0 %v285
    %v526 = vpop.f32.mrf.mxu0
    %v527 = vadd.f32 %v107, %v526
    %528 = vmatmul.f32.gmra.mxu0 %v288
    %v529 = vpop.f32.mrf.mxu0
    %v530 = vadd.f32 %v107, %v529
    %531 = vmatmul.f32.gmra.mxu0 %v291
    %v532 = vpop.f32.mrf.mxu0
    %v533 = vadd.f32 %v107, %v532
    %534 = vmatmul.f32.gmra.mxu0 %v294
    %v535 = vpop.f32.mrf.mxu0
    %v536 = vadd.f32 %v107, %v535
    %537 = vmatmul.f32.gmra.mxu0 %v297
    %v538 = vpop.f32.mrf.mxu0
    %v539 = vadd.f32 %v107, %v538
    %540 = vmatmul.f32.gmra.mxu0 %v300
    %v541 = vpop.f32.mrf.mxu0
    %v542 = vadd.f32 %v107, %v541
    %543 = vmatmul.f32.gmra.mxu0 %v303
    %v544 = vpop.f32.mrf.mxu0
    %v545 = vadd.f32 %v107, %v544
    %546 = vmatmul.f32.gmra.mxu0 %v306
    %v547 = vpop.f32.mrf.mxu0
    %v548 = vadd.f32 %v107, %v547
    %549 = vmatmul.f32.gmra.mxu0 %v309
    %v550 = vpop.f32.mrf.mxu0
    %v551 = vadd.f32 %v107, %v550
    %552 = vmatmul.f32.gmra.mxu0 %v312
    %v553 = vpop.f32.mrf.mxu0
    %v554 = vadd.f32 %v107, %v553
    %555 = vmatmul.f32.gmra.mxu0 %v315
    %v556 = vpop.f32.mrf.mxu0
    %v557 = vadd.f32 %v107, %v556
    %558 = vmatmul.f32.gmra.mxu0 %v318
    %v559 = vpop.f32.mrf.mxu0
    %v560 = vadd.f32 %v107, %v559
    %561 = vmatmul.f32.gmra.mxu0 %v321
    %v562 = vpop.f32.mrf.mxu0
    %v563 = vadd.f32 %v107, %v562
    %564 = vmatmul.f32.gmra.mxu0 %v324
    %v565 = vpop.f32.mrf.mxu0
    %v566 = vadd.f32 %v107, %v565
    %567 = vmatmul.f32.gmra.mxu0 %v327
    %v568 = vpop.f32.mrf.mxu0
    %v569 = vadd.f32 %v107, %v568
    %570 = vmatmul.f32.gmra.mxu0 %v330
    %v571 = vpop.f32.mrf.mxu0
    %v572 = vadd.f32 %v107, %v571
    %573 = vmatmul.f32.gmra.mxu0 %v333
    %v574 = vpop.f32.mrf.mxu0
    %v575 = vadd.f32 %v107, %v574
    %576 = vdwg.mxu0
    %v577 = vmax.f32 %v353, 0.0
    %v578 = vmax.f32 %v356, 0.0
    %v579 = vmax.f32 %v359, 0.0
    %v580 = vmax.f32 %v362, 0.0
    %v581 = vmax.f32 %v365, 0.0
    %v582 = vmax.f32 %v368, 0.0
    %v583 = vmax.f32 %v371, 0.0
    %v584 = vmax.f32 %v374, 0.0
    %v585 = vmax.f32 %v377, 0.0
    %v586 = vmax.f32 %v380, 0.0
    %v587 = vmax.f32 %v383, 0.0
    %v588 = vmax.f32 %v386, 0.0
    %v589 = vmax.f32 %v389, 0.0
    %v590 = vmax.f32 %v392, 0.0
    %v591 = vmax.f32 %v395, 0.0
    %v592 = vmax.f32 %v398, 0.0
    %v593 = vmax.f32 %v401, 0.0
    %v594 = vmax.f32 %v404, 0.0
    %v595 = vmax.f32 %v407, 0.0
    %v596 = vmax.f32 %v410, 0.0
    %v597 = vmax.f32 %v413, 0.0
    %v598 = vmax.f32 %v416, 0.0
    %v599 = vmax.f32 %v419, 0.0
    %v600 = vmax.f32 %v422, 0.0
    %v601 = vmax.f32 %v425, 0.0
    %v602 = vmax.f32 %v428, 0.0
    %v603 = vmax.f32 %v431, 0.0
    %v604 = vmax.f32 %v434, 0.0
    %v605 = vmax.f32 %v437, 0.0
    %v606 = vmax.f32 %v440, 0.0
    %v607 = vmax.f32 %v443, 0.0
    %v608 = vmax.f32 %v446, 0.0
    %v609 = vmax.f32 %v449, 0.0
    %v610 = vmax.f32 %v452, 0.0
    %v611 = vmax.f32 %v455, 0.0
    %v612 = vmax.f32 %v458, 0.0
    %v613 = vmax.f32 %v461, 0.0
    %v614 = vmax.f32 %v464, 0.0
    %v615 = vmax.f32 %v467, 0.0
    %v616 = vmax.f32 %v470, 0.0
    %v617 = vmax.f32 %v473, 0.0
    %v618 = vmax.f32 %v476, 0.0
    %v619 = vmax.f32 %v479, 0.0
    %v620 = vmax.f32 %v482, 0.0
    %v621 = vmax.f32 %v485, 0.0
    %v622 = vmax.f32 %v488, 0.0
    %v623 = vmax.f32 %v491, 0.0
    %v624 = vmax.f32 %v494, 0.0
    %v625 = vmax.f32 %v497, 0.0
    %v626 = vmax.f32 %v500, 0.0
    %v627 = vmax.f32 %v503, 0.0
    %v628 = vmax.f32 %v506, 0.0
    %v629 = vmax.f32 %v509, 0.0
    %v630 = vmax.f32 %v512, 0.0
    %v631 = vmax.f32 %v515, 0.0
    %v632 = vmax.f32 %v518, 0.0
    %v633 = vmax.f32 %v521, 0.0
    %v634 = vmax.f32 %v524, 0.0
    %v635 = vmax.f32 %v527, 0.0
    %v636 = vmax.f32 %v530, 0.0
    %v637 = vmax.f32 %v533, 0.0
    %v638 = vmax.f32 %v536, 0.0
    %v639 = vmax.f32 %v539, 0.0
    %v640 = vmax.f32 %v542, 0.0
    %v641 = vmax.f32 %v545, 0.0
    %v642 = vmax.f32 %v548, 0.0
    %v643 = vmax.f32 %v551, 0.0
    %v644 = vmax.f32 %v554, 0.0
    %v645 = vmax.f32 %v557, 0.0
    %v646 = vmax.f32 %v560, 0.0
    %v647 = vmax.f32 %v563, 0.0
    %v648 = vmax.f32 %v566, 0.0
    %v649 = vmax.f32 %v569, 0.0
    %v650 = vmax.f32 %v572, 0.0
    %v651 = vmax.f32 %v575, 0.0
    %v652 = vld [vmem:[%s3] sm:$0xff]
    %v653 = vld [vmem:[%s3 + $0x8] sm:$0xff]
    %v654 = vld [vmem:[%s3 + $0x10] sm:$0xff]
    %v655 = vld [vmem:[%s3 + $0x18] sm:$0xff]
    %v656 = vld [vmem:[%s4] sm:$0x1]
    %v658 = vperm.slane %v656, 0
    %vm660 = vcmask 261120
    %v662 = vsel %vm660, %v577, 0
    %v665 = vsel %vm660, %v578, 0
    %v668 = vsel %vm660, %v579, 0
    %v671 = vsel %vm660, %v580, 0
    %v674 = vsel %vm660, %v581, 0
    %v677 = vsel %vm660, %v582, 0
    %v680 = vsel %vm660, %v583, 0
    %v683 = vsel %vm660, %v584, 0
    %v686 = vsel %vm660, %v585, 0
    %v689 = vsel %vm660, %v586, 0
    %v692 = vsel %vm660, %v587, 0
    %v695 = vsel %vm660, %v588, 0
    %v698 = vsel %vm660, %v589, 0
    %v701 = vsel %vm660, %v590, 0
    %v704 = vsel %vm660, %v591, 0
    %v707 = vsel %vm660, %v592, 0
    %v710 = vsel %vm660, %v593, 0
    %v713 = vsel %vm660, %v594, 0
    %v716 = vsel %vm660, %v595, 0
    %v719 = vsel %vm660, %v596, 0
    %v722 = vsel %vm660, %v597, 0
    %v725 = vsel %vm660, %v598, 0
    %v728 = vsel %vm660, %v599, 0
    %v731 = vsel %vm660, %v600, 0
    %v734 = vsel %vm660, %v601, 0
    %v737 = vsel %vm660, %v602, 0
    %v740 = vsel %vm660, %v603, 0
    %v743 = vsel %vm660, %v604, 0
    %v746 = vsel %vm660, %v605, 0
    %v749 = vsel %vm660, %v606, 0
    %v752 = vsel %vm660, %v607, 0
    %v755 = vsel %vm660, %v608, 0
    %v758 = vsel %vm660, %v609, 0
    %v761 = vsel %vm660, %v610, 0
    %v764 = vsel %vm660, %v611, 0
    %v767 = vsel %vm660, %v612, 0
    %v770 = vsel %vm660, %v613, 0
    %v773 = vsel %vm660, %v614, 0
    %v776 = vsel %vm660, %v615, 0
    %v779 = vsel %vm660, %v616, 0
    %v782 = vsel %vm660, %v617, 0
    %v785 = vsel %vm660, %v618, 0
    %v788 = vsel %vm660, %v619, 0
    %v791 = vsel %vm660, %v620, 0
    %v794 = vsel %vm660, %v621, 0
    %v797 = vsel %vm660, %v622, 0
    %v800 = vsel %vm660, %v623, 0
    %v803 = vsel %vm660, %v624, 0
    %v806 = vsel %vm660, %v625, 0
    %v809 = vsel %vm660, %v626, 0
    %v812 = vsel %vm660, %v627, 0
    %v815 = vsel %vm660, %v628, 0
    %v818 = vsel %vm660, %v629, 0
    %v821 = vsel %vm660, %v630, 0
    %v824 = vsel %vm660, %v631, 0
    %v827 = vsel %vm660, %v632, 0
    %v830 = vsel %vm660, %v633, 0
    %v833 = vsel %vm660, %v634, 0
    %v836 = vsel %vm660, %v635, 0
    %v839 = vsel %vm660, %v636, 0
    %v842 = vsel %vm660, %v637, 0
    %v845 = vsel %vm660, %v638, 0
    %v848 = vsel %vm660, %v639, 0
    %v851 = vsel %vm660, %v640, 0
    %v854 = vsel %vm660, %v641, 0
    %v857 = vsel %vm660, %v642, 0
    %v860 = vsel %vm660, %v643, 0
    %v863 = vsel %vm660, %v644, 0
    %v866 = vsel %vm660, %v645, 0
    %v869 = vsel %vm660, %v646, 0
    %v872 = vsel %vm660, %v647, 0
    %v875 = vsel %vm660, %v648, 0
    %v878 = vsel %vm660, %v649, 0
    %v881 = vsel %vm660, %v650, 0
    %v884 = vsel %vm660, %v651, 0
    %886 = vmatpush.msra.mxu0 0.0
    %887 = vmatpush.msra.mxu0 0.0
    %888 = vmatpush.msra.mxu0 0.0
    %889 = vmatpush.msra.mxu0 0.0
    %890 = vmatpush.msra.mxu0 0.0
    %891 = vmatpush.msra.mxu0 0.0
    %892 = vmatpush.msra.mxu0 0.0
    %893 = vmatpush.msra.mxu0 0.0
    %894 = vmatpush.msra.mxu0 0.0
    %895 = vmatpush.msra.mxu0 0.0
    %896 = vmatpush.msra.mxu0 0.0
    %897 = vmatpush.msra.mxu0 0.0
    %898 = vmatpush.msra.mxu0 %v655
    %899 = vmatpush.msra.mxu0 %v654
    %900 = vmatpush.msra.mxu0 %v653
    %901 = vmatpush.msra.mxu0 %v652
    %902 = vmatmul.f32.gmra.mxu0 %v662
    %v903 = vpop.f32.mrf.mxu0
    %v904 = vadd.f32 %v658, %v903
    %905 = vmatmul.f32.gmra.mxu0 %v665
    %v906 = vpop.f32.mrf.mxu0
    %v907 = vadd.f32 %v658, %v906
    %908 = vmatmul.f32.gmra.mxu0 %v668
    %v909 = vpop.f32.mrf.mxu0
    %v910 = vadd.f32 %v658, %v909
    %911 = vmatmul.f32.gmra.mxu0 %v671
    %v912 = vpop.f32.mrf.mxu0
    %v913 = vadd.f32 %v658, %v912
    %914 = vmatmul.f32.gmra.mxu0 %v674
    %v915 = vpop.f32.mrf.mxu0
    %v916 = vadd.f32 %v658, %v915
    %917 = vmatmul.f32.gmra.mxu0 %v677
    %v918 = vpop.f32.mrf.mxu0
    %v919 = vadd.f32 %v658, %v918
    %920 = vmatmul.f32.gmra.mxu0 %v680
    %v921 = vpop.f32.mrf.mxu0
    %v922 = vadd.f32 %v658, %v921
    %923 = vmatmul.f32.gmra.mxu0 %v683
    %v924 = vpop.f32.mrf.mxu0
    %v925 = vadd.f32 %v658, %v924
    %926 = vmatmul.f32.gmra.mxu0 %v686
    %v927 = vpop.f32.mrf.mxu0
    %v928 = vadd.f32 %v658, %v927
    %929 = vmatmul.f32.gmra.mxu0 %v689
    %v930 = vpop.f32.mrf.mxu0
    %v931 = vadd.f32 %v658, %v930
    %932 = vmatmul.f32.gmra.mxu0 %v692
    %v933 = vpop.f32.mrf.mxu0
    %v934 = vadd.f32 %v658, %v933
    %935 = vmatmul.f32.gmra.mxu0 %v695
    %v936 = vpop.f32.mrf.mxu0
    %v937 = vadd.f32 %v658, %v936
    %938 = vmatmul.f32.gmra.mxu0 %v698
    %v939 = vpop.f32.mrf.mxu0
    %v940 = vadd.f32 %v658, %v939
    %941 = vmatmul.f32.gmra.mxu0 %v701
    %v942 = vpop.f32.mrf.mxu0
    %v943 = vadd.f32 %v658, %v942
    %944 = vmatmul.f32.gmra.mxu0 %v704
    %v945 = vpop.f32.mrf.mxu0
    %v946 = vadd.f32 %v658, %v945
    %947 = vmatmul.f32.gmra.mxu0 %v707
    %v948 = vpop.f32.mrf.mxu0
    %v949 = vadd.f32 %v658, %v948
    %950 = vmatmul.f32.gmra.mxu0 %v710
    %v951 = vpop.f32.mrf.mxu0
    %v952 = vadd.f32 %v658, %v951
    %953 = vmatmul.f32.gmra.mxu0 %v713
    %v954 = vpop.f32.mrf.mxu0
    %v955 = vadd.f32 %v658, %v954
    %956 = vmatmul.f32.gmra.mxu0 %v716
    %v957 = vpop.f32.mrf.mxu0
    %v958 = vadd.f32 %v658, %v957
    %959 = vmatmul.f32.gmra.mxu0 %v719
    %v960 = vpop.f32.mrf.mxu0
    %v961 = vadd.f32 %v658, %v960
    %962 = vmatmul.f32.gmra.mxu0 %v722
    %v963 = vpop.f32.mrf.mxu0
    %v964 = vadd.f32 %v658, %v963
    %965 = vmatmul.f32.gmra.mxu0 %v725
    %v966 = vpop.f32.mrf.mxu0
    %v967 = vadd.f32 %v658, %v966
    %968 = vmatmul.f32.gmra.mxu0 %v728
    %v969 = vpop.f32.mrf.mxu0
    %v970 = vadd.f32 %v658, %v969
    %971 = vmatmul.f32.gmra.mxu0 %v731
    %v972 = vpop.f32.mrf.mxu0
    %v973 = vadd.f32 %v658, %v972
    %974 = vmatmul.f32.gmra.mxu0 %v734
    %v975 = vpop.f32.mrf.mxu0
    %v976 = vadd.f32 %v658, %v975
    %977 = vmatmul.f32.gmra.mxu0 %v737
    %v978 = vpop.f32.mrf.mxu0
    %v979 = vadd.f32 %v658, %v978
    %980 = vmatmul.f32.gmra.mxu0 %v740
    %v981 = vpop.f32.mrf.mxu0
    %v982 = vadd.f32 %v658, %v981
    %983 = vmatmul.f32.gmra.mxu0 %v743
    %v984 = vpop.f32.mrf.mxu0
    %v985 = vadd.f32 %v658, %v984
    %986 = vmatmul.f32.gmra.mxu0 %v746
    %v987 = vpop.f32.mrf.mxu0
    %v988 = vadd.f32 %v658, %v987
    %989 = vmatmul.f32.gmra.mxu0 %v749
    %v990 = vpop.f32.mrf.mxu0
    %v991 = vadd.f32 %v658, %v990
    %992 = vmatmul.f32.gmra.mxu0 %v752
    %v993 = vpop.f32.mrf.mxu0
    %v994 = vadd.f32 %v658, %v993
    %995 = vmatmul.f32.gmra.mxu0 %v755
    %v996 = vpop.f32.mrf.mxu0
    %v997 = vadd.f32 %v658, %v996
    %998 = vmatmul.f32.gmra.mxu0 %v758
    %v999 = vpop.f32.mrf.mxu0
    %v1000 = vadd.f32 %v658, %v999
    %1001 = vmatmul.f32.gmra.mxu0 %v761
    %v1002 = vpop.f32.mrf.mxu0
    %v1003 = vadd.f32 %v658, %v1002
    %1004 = vmatmul.f32.gmra.mxu0 %v764
    %v1005 = vpop.f32.mrf.mxu0
    %v1006 = vadd.f32 %v658, %v1005
    %1007 = vmatmul.f32.gmra.mxu0 %v767
    %v1008 = vpop.f32.mrf.mxu0
    %v1009 = vadd.f32 %v658, %v1008
    %1010 = vmatmul.f32.gmra.mxu0 %v770
    %v1011 = vpop.f32.mrf.mxu0
    %v1012 = vadd.f32 %v658, %v1011
    %1013 = vmatmul.f32.gmra.mxu0 %v773
    %v1014 = vpop.f32.mrf.mxu0
    %v1015 = vadd.f32 %v658, %v1014
    %1016 = vmatmul.f32.gmra.mxu0 %v776
    %v1017 = vpop.f32.mrf.mxu0
    %v1018 = vadd.f32 %v658, %v1017
    %1019 = vmatmul.f32.gmra.mxu0 %v779
    %v1020 = vpop.f32.mrf.mxu0
    %v1021 = vadd.f32 %v658, %v1020
    %1022 = vmatmul.f32.gmra.mxu0 %v782
    %v1023 = vpop.f32.mrf.mxu0
    %v1024 = vadd.f32 %v658, %v1023
    %1025 = vmatmul.f32.gmra.mxu0 %v785
    %v1026 = vpop.f32.mrf.mxu0
    %v1027 = vadd.f32 %v658, %v1026
    %1028 = vmatmul.f32.gmra.mxu0 %v788
    %v1029 = vpop.f32.mrf.mxu0
    %v1030 = vadd.f32 %v658, %v1029
    %1031 = vmatmul.f32.gmra.mxu0 %v791
    %v1032 = vpop.f32.mrf.mxu0
    %v1033 = vadd.f32 %v658, %v1032
    %1034 = vmatmul.f32.gmra.mxu0 %v794
    %v1035 = vpop.f32.mrf.mxu0
    %v1036 = vadd.f32 %v658, %v1035
    %1037 = vmatmul.f32.gmra.mxu0 %v797
    %v1038 = vpop.f32.mrf.mxu0
    %v1039 = vadd.f32 %v658, %v1038
    %1040 = vmatmul.f32.gmra.mxu0 %v800
    %v1041 = vpop.f32.mrf.mxu0
    %v1042 = vadd.f32 %v658, %v1041
    %1043 = vmatmul.f32.gmra.mxu0 %v803
    %v1044 = vpop.f32.mrf.mxu0
    %v1045 = vadd.f32 %v658, %v1044
    %1046 = vmatmul.f32.gmra.mxu0 %v806
    %v1047 = vpop.f32.mrf.mxu0
    %v1048 = vadd.f32 %v658, %v1047
    %1049 = vmatmul.f32.gmra.mxu0 %v809
    %v1050 = vpop.f32.mrf.mxu0
    %v1051 = vadd.f32 %v658, %v1050
    %1052 = vmatmul.f32.gmra.mxu0 %v812
    %v1053 = vpop.f32.mrf.mxu0
    %v1054 = vadd.f32 %v658, %v1053
    %1055 = vmatmul.f32.gmra.mxu0 %v815
    %v1056 = vpop.f32.mrf.mxu0
    %v1057 = vadd.f32 %v658, %v1056
    %1058 = vmatmul.f32.gmra.mxu0 %v818
    %v1059 = vpop.f32.mrf.mxu0
    %v1060 = vadd.f32 %v658, %v1059
    %1061 = vmatmul.f32.gmra.mxu0 %v821
    %v1062 = vpop.f32.mrf.mxu0
    %v1063 = vadd.f32 %v658, %v1062
    %1064 = vmatmul.f32.gmra.mxu0 %v824
    %v1065 = vpop.f32.mrf.mxu0
    %v1066 = vadd.f32 %v658, %v1065
    %1067 = vmatmul.f32.gmra.mxu0 %v827
    %v1068 = vpop.f32.mrf.mxu0
    %v1069 = vadd.f32 %v658, %v1068
    %1070 = vmatmul.f32.gmra.mxu0 %v830
    %v1071 = vpop.f32.mrf.mxu0
    %v1072 = vadd.f32 %v658, %v1071
    %1073 = vmatmul.f32.gmra.mxu0 %v833
    %v1074 = vpop.f32.mrf.mxu0
    %v1075 = vadd.f32 %v658, %v1074
    %1076 = vmatmul.f32.gmra.mxu0 %v836
    %v1077 = vpop.f32.mrf.mxu0
    %v1078 = vadd.f32 %v658, %v1077
    %1079 = vmatmul.f32.gmra.mxu0 %v839
    %v1080 = vpop.f32.mrf.mxu0
    %v1081 = vadd.f32 %v658, %v1080
    %1082 = vmatmul.f32.gmra.mxu0 %v842
    %v1083 = vpop.f32.mrf.mxu0
    %v1084 = vadd.f32 %v658, %v1083
    %1085 = vmatmul.f32.gmra.mxu0 %v845
    %v1086 = vpop.f32.mrf.mxu0
    %v1087 = vadd.f32 %v658, %v1086
    %1088 = vmatmul.f32.gmra.mxu0 %v848
    %v1089 = vpop.f32.mrf.mxu0
    %v1090 = vadd.f32 %v658, %v1089
    %1091 = vmatmul.f32.gmra.mxu0 %v851
    %v1092 = vpop.f32.mrf.mxu0
    %v1093 = vadd.f32 %v658, %v1092
    %1094 = vmatmul.f32.gmra.mxu0 %v854
    %v1095 = vpop.f32.mrf.mxu0
    %v1096 = vadd.f32 %v658, %v1095
    %1097 = vmatmul.f32.gmra.mxu0 %v857
    %v1098 = vpop.f32.mrf.mxu0
    %v1099 = vadd.f32 %v658, %v1098
    %1100 = vmatmul.f32.gmra.mxu0 %v860
    %v1101 = vpop.f32.mrf.mxu0
    %v1102 = vadd.f32 %v658, %v1101
    %1103 = vmatmul.f32.gmra.mxu0 %v863
    %v1104 = vpop.f32.mrf.mxu0
    %v1105 = vadd.f32 %v658, %v1104
    %1106 = vmatmul.f32.gmra.mxu0 %v866
    %v1107 = vpop.f32.mrf.mxu0
    %v1108 = vadd.f32 %v658, %v1107
    %1109 = vmatmul.f32.gmra.mxu0 %v869
    %v1110 = vpop.f32.mrf.mxu0
    %v1111 = vadd.f32 %v658, %v1110
    %1112 = vmatmul.f32.gmra.mxu0 %v872
    %v1113 = vpop.f32.mrf.mxu0
    %v1114 = vadd.f32 %v658, %v1113
    %1115 = vmatmul.f32.gmra.mxu0 %v875
    %v1116 = vpop.f32.mrf.mxu0
    %v1117 = vadd.f32 %v658, %v1116
    %1118 = vmatmul.f32.gmra.mxu0 %v878
    %v1119 = vpop.f32.mrf.mxu0
    %v1120 = vadd.f32 %v658, %v1119
    %1121 = vmatmul.f32.gmra.mxu0 %v881
    %v1122 = vpop.f32.mrf.mxu0
    %v1123 = vadd.f32 %v658, %v1122
    %1124 = vmatmul.f32.gmra.mxu0 %v884
    %v1125 = vpop.f32.mrf.mxu0
    %v1126 = vadd.f32 %v658, %v1125
    %1127 = vdwg.mxu0
    %v1128 = vmax.f32 %v904, 0.0
    %v1129 = vmax.f32 %v907, 0.0
    %v1130 = vmax.f32 %v910, 0.0
    %v1131 = vmax.f32 %v913, 0.0
    %v1132 = vmax.f32 %v916, 0.0
    %v1133 = vmax.f32 %v919, 0.0
    %v1134 = vmax.f32 %v922, 0.0
    %v1135 = vmax.f32 %v925, 0.0
    %v1136 = vmax.f32 %v928, 0.0
    %v1137 = vmax.f32 %v931, 0.0
    %v1138 = vmax.f32 %v934, 0.0
    %v1139 = vmax.f32 %v937, 0.0
    %v1140 = vmax.f32 %v940, 0.0
    %v1141 = vmax.f32 %v943, 0.0
    %v1142 = vmax.f32 %v946, 0.0
    %v1143 = vmax.f32 %v949, 0.0
    %v1144 = vmax.f32 %v952, 0.0
    %v1145 = vmax.f32 %v955, 0.0
    %v1146 = vmax.f32 %v958, 0.0
    %v1147 = vmax.f32 %v961, 0.0
    %v1148 = vmax.f32 %v964, 0.0
    %v1149 = vmax.f32 %v967, 0.0
    %v1150 = vmax.f32 %v970, 0.0
    %v1151 = vmax.f32 %v973, 0.0
    %v1152 = vmax.f32 %v976, 0.0
    %v1153 = vmax.f32 %v979, 0.0
    %v1154 = vmax.f32 %v982, 0.0
    %v1155 = vmax.f32 %v985, 0.0
    %v1156 = vmax.f32 %v988, 0.0
    %v1157 = vmax.f32 %v991, 0.0
    %v1158 = vmax.f32 %v994, 0.0
    %v1159 = vmax.f32 %v997, 0.0
    %v1160 = vmax.f32 %v1000, 0.0
    %v1161 = vmax.f32 %v1003, 0.0
    %v1162 = vmax.f32 %v1006, 0.0
    %v1163 = vmax.f32 %v1009, 0.0
    %v1164 = vmax.f32 %v1012, 0.0
    %v1165 = vmax.f32 %v1015, 0.0
    %v1166 = vmax.f32 %v1018, 0.0
    %v1167 = vmax.f32 %v1021, 0.0
    %v1168 = vmax.f32 %v1024, 0.0
    %v1169 = vmax.f32 %v1027, 0.0
    %v1170 = vmax.f32 %v1030, 0.0
    %v1171 = vmax.f32 %v1033, 0.0
    %v1172 = vmax.f32 %v1036, 0.0
    %v1173 = vmax.f32 %v1039, 0.0
    %v1174 = vmax.f32 %v1042, 0.0
    %v1175 = vmax.f32 %v1045, 0.0
    %v1176 = vmax.f32 %v1048, 0.0
    %v1177 = vmax.f32 %v1051, 0.0
    %v1178 = vmax.f32 %v1054, 0.0
    %v1179 = vmax.f32 %v1057, 0.0
    %v1180 = vmax.f32 %v1060, 0.0
    %v1181 = vmax.f32 %v1063, 0.0
    %v1182 = vmax.f32 %v1066, 0.0
    %v1183 = vmax.f32 %v1069, 0.0
    %v1184 = vmax.f32 %v1072, 0.0
    %v1185 = vmax.f32 %v1075, 0.0
    %v1186 = vmax.f32 %v1078, 0.0
    %v1187 = vmax.f32 %v1081, 0.0
    %v1188 = vmax.f32 %v1084, 0.0
    %v1189 = vmax.f32 %v1087, 0.0
    %v1190 = vmax.f32 %v1090, 0.0
    %v1191 = vmax.f32 %v1093, 0.0
    %v1192 = vmax.f32 %v1096, 0.0
    %v1193 = vmax.f32 %v1099, 0.0
    %v1194 = vmax.f32 %v1102, 0.0
    %v1195 = vmax.f32 %v1105, 0.0
    %v1196 = vmax.f32 %v1108, 0.0
    %v1197 = vmax.f32 %v1111, 0.0
    %v1198 = vmax.f32 %v1114, 0.0
    %v1199 = vmax.f32 %v1117, 0.0
    %v1200 = vmax.f32 %v1120, 0.0
    %v1201 = vmax.f32 %v1123, 0.0
    %v1202 = vmax.f32 %v1126, 0.0
    %v1203 = vld [vmem:[%s5] sm:$0x1]
    %s1204 = sld [smem:[#allocation2]]
    %v1205 = vstv %s1204
    %v1207 = vsel %vm660, %v1203, 0
    %v1210 = vsel %vm660, %v1128, 0
    %v1213 = vsel %vm660, %v1129, 0
    %v1216 = vsel %vm660, %v1130, 0
    %v1219 = vsel %vm660, %v1131, 0
    %v1222 = vsel %vm660, %v1132, 0
    %v1225 = vsel %vm660, %v1133, 0
    %v1228 = vsel %vm660, %v1134, 0
    %v1231 = vsel %vm660, %v1135, 0
    %v1234 = vsel %vm660, %v1136, 0
    %v1237 = vsel %vm660, %v1137, 0
    %v1240 = vsel %vm660, %v1138, 0
    %v1243 = vsel %vm660, %v1139, 0
    %v1246 = vsel %vm660, %v1140, 0
    %v1249 = vsel %vm660, %v1141, 0
    %v1252 = vsel %vm660, %v1142, 0
    %v1255 = vsel %vm660, %v1143, 0
    %v1258 = vsel %vm660, %v1144, 0
    %v1261 = vsel %vm660, %v1145, 0
    %v1264 = vsel %vm660, %v1146, 0
    %v1267 = vsel %vm660, %v1147, 0
    %v1270 = vsel %vm660, %v1148, 0
    %v1273 = vsel %vm660, %v1149, 0
    %v1276 = vsel %vm660, %v1150, 0
    %v1279 = vsel %vm660, %v1151, 0
    %v1282 = vsel %vm660, %v1152, 0
    %v1285 = vsel %vm660, %v1153, 0
    %v1288 = vsel %vm660, %v1154, 0
    %v1291 = vsel %vm660, %v1155, 0
    %v1294 = vsel %vm660, %v1156, 0
    %v1297 = vsel %vm660, %v1157, 0
    %v1300 = vsel %vm660, %v1158, 0
    %v1303 = vsel %vm660, %v1159, 0
    %v1306 = vsel %vm660, %v1160, 0
    %v1309 = vsel %vm660, %v1161, 0
    %v1312 = vsel %vm660, %v1162, 0
    %v1315 = vsel %vm660, %v1163, 0
    %v1318 = vsel %vm660, %v1164, 0
    %v1321 = vsel %vm660, %v1165, 0
    %v1324 = vsel %vm660, %v1166, 0
    %v1327 = vsel %vm660, %v1167, 0
    %v1330 = vsel %vm660, %v1168, 0
    %v1333 = vsel %vm660, %v1169, 0
    %v1336 = vsel %vm660, %v1170, 0
    %v1339 = vsel %vm660, %v1171, 0
    %v1342 = vsel %vm660, %v1172, 0
    %v1345 = vsel %vm660, %v1173, 0
    %v1348 = vsel %vm660, %v1174, 0
    %v1351 = vsel %vm660, %v1175, 0
    %v1354 = vsel %vm660, %v1176, 0
    %v1357 = vsel %vm660, %v1177, 0
    %v1360 = vsel %vm660, %v1178, 0
    %v1363 = vsel %vm660, %v1179, 0
    %v1366 = vsel %vm660, %v1180, 0
    %v1369 = vsel %vm660, %v1181, 0
    %v1372 = vsel %vm660, %v1182, 0
    %v1375 = vsel %vm660, %v1183, 0
    %v1378 = vsel %vm660, %v1184, 0
    %v1381 = vsel %vm660, %v1185, 0
    %v1384 = vsel %vm660, %v1186, 0
    %v1387 = vsel %vm660, %v1187, 0
    %v1390 = vsel %vm660, %v1188, 0
    %v1393 = vsel %vm660, %v1189, 0
    %v1396 = vsel %vm660, %v1190, 0
    %v1399 = vsel %vm660, %v1191, 0
    %v1402 = vsel %vm660, %v1192, 0
    %v1405 = vsel %vm660, %v1193, 0
    %v1408 = vsel %vm660, %v1194, 0
    %v1411 = vsel %vm660, %v1195, 0
    %v1414 = vsel %vm660, %v1196, 0
    %v1417 = vsel %vm660, %v1197, 0
    %v1420 = vsel %vm660, %v1198, 0
    %v1423 = vsel %vm660, %v1199, 0
    %v1426 = vsel %vm660, %v1200, 0
    %v1429 = vsel %vm660, %v1201, 0
    %v1432 = vsel %vm660, %v1202, 0
    %1434 = vmatpush.xpose.msra.mxu0 %v1255
    %1435 = vmatpush.xpose.msra.mxu0 %v1252
    %1436 = vmatpush.xpose.msra.mxu0 %v1249
    %1437 = vmatpush.xpose.msra.mxu0 %v1246
    %1438 = vmatpush.xpose.msra.mxu0 %v1243
    %1439 = vmatpush.xpose.msra.mxu0 %v1240
    %1440 = vmatpush.xpose.msra.mxu0 %v1237
    %1441 = vmatpush.xpose.msra.mxu0 %v1234
    %1442 = vmatpush.xpose.msra.mxu0 %v1231
    %1443 = vmatpush.xpose.msra.mxu0 %v1228
    %1444 = vmatpush.xpose.msra.mxu0 %v1225
    %1445 = vmatpush.xpose.msra.mxu0 %v1222
    %1446 = vmatpush.xpose.msra.mxu0 %v1219
    %1447 = vmatpush.xpose.msra.mxu0 %v1216
    %1448 = vmatpush.xpose.msra.mxu0 %v1213
    %1449 = vmatpush.xpose.msra.mxu0 %v1210
    %1450 = vmatmul.f32.gmra.mxu0 %v1207
    %v1451 = vpop.f32.mrf.mxu0
    %v1452 = vadd.f32 %v1205, %v1451
    %1453 = vdwg.mxu0
    %1454 = vmatpush.xpose.msra.mxu0 %v1303
    %1455 = vmatpush.xpose.msra.mxu0 %v1300
    %1456 = vmatpush.xpose.msra.mxu0 %v1297
    %1457 = vmatpush.xpose.msra.mxu0 %v1294
    %1458 = vmatpush.xpose.msra.mxu0 %v1291
    %1459 = vmatpush.xpose.msra.mxu0 %v1288
    %1460 = vmatpush.xpose.msra.mxu0 %v1285
    %1461 = vmatpush.xpose.msra.mxu0 %v1282
    %1462 = vmatpush.xpose.msra.mxu0 %v1279
    %1463 = vmatpush.xpose.msra.mxu0 %v1276
    %1464 = vmatpush.xpose.msra.mxu0 %v1273
    %1465 = vmatpush.xpose.msra.mxu0 %v1270
    %1466 = vmatpush.xpose.msra.mxu0 %v1267
    %1467 = vmatpush.xpose.msra.mxu0 %v1264
    %1468 = vmatpush.xpose.msra.mxu0 %v1261
    %1469 = vmatpush.xpose.msra.mxu0 %v1258
    %1470 = vmatmul.f32.gmra.mxu0 %v1207
    %v1471 = vpop.f32.mrf.mxu0
    %v1472 = vadd.f32 %v1205, %v1471
    %1473 = vdwg.mxu0
    %1474 = vmatpush.xpose.msra.mxu0 %v1351
    %1475 = vmatpush.xpose.msra.mxu0 %v1348
    %1476 = vmatpush.xpose.msra.mxu0 %v1345
    %1477 = vmatpush.xpose.msra.mxu0 %v1342
    %1478 = vmatpush.xpose.msra.mxu0 %v1339
    %1479 = vmatpush.xpose.msra.mxu0 %v1336
    %1480 = vmatpush.xpose.msra.mxu0 %v1333
    %1481 = vmatpush.xpose.msra.mxu0 %v1330
    %1482 = vmatpush.xpose.msra.mxu0 %v1327
    %1483 = vmatpush.xpose.msra.mxu0 %v1324
    %1484 = vmatpush.xpose.msra.mxu0 %v1321
    %1485 = vmatpush.xpose.msra.mxu0 %v1318
    %1486 = vmatpush.xpose.msra.mxu0 %v1315
    %1487 = vmatpush.xpose.msra.mxu0 %v1312
    %1488 = vmatpush.xpose.msra.mxu0 %v1309
    %1489 = vmatpush.xpose.msra.mxu0 %v1306
    %1490 = vmatmul.f32.gmra.mxu0 %v1207
    %v1491 = vpop.f32.mrf.mxu0
    %v1492 = vadd.f32 %v1205, %v1491
    %1493 = vdwg.mxu0
    %1494 = vmatpush.xpose.msra.mxu0 %v1399
    %1495 = vmatpush.xpose.msra.mxu0 %v1396
    %1496 = vmatpush.xpose.msra.mxu0 %v1393
    %1497 = vmatpush.xpose.msra.mxu0 %v1390
    %1498 = vmatpush.xpose.msra.mxu0 %v1387
    %1499 = vmatpush.xpose.msra.mxu0 %v1384
    %1500 = vmatpush.xpose.msra.mxu0 %v1381
    %1501 = vmatpush.xpose.msra.mxu0 %v1378
    %1502 = vmatpush.xpose.msra.mxu0 %v1375
    %1503 = vmatpush.xpose.msra.mxu0 %v1372
    %1504 = vmatpush.xpose.msra.mxu0 %v1369
    %1505 = vmatpush.xpose.msra.mxu0 %v1366
    %1506 = vmatpush.xpose.msra.mxu0 %v1363
    %1507 = vmatpush.xpose.msra.mxu0 %v1360
    %1508 = vmatpush.xpose.msra.mxu0 %v1357
    %1509 = vmatpush.xpose.msra.mxu0 %v1354
    %1510 = vmatmul.f32.gmra.mxu0 %v1207
    %v1511 = vpop.f32.mrf.mxu0
    %v1512 = vadd.f32 %v1205, %v1511
    %1513 = vdwg.mxu0
    %1514 = vmatpush.xpose.msra.mxu0 0.0
    %1515 = vmatpush.xpose.msra.mxu0 0.0
    %1516 = vmatpush.xpose.msra.mxu0 0.0
    %1517 = vmatpush.xpose.msra.mxu0 0.0
    %1518 = vmatpush.xpose.msra.mxu0 0.0
    %1519 = vmatpush.xpose.msra.mxu0 %v1432
    %1520 = vmatpush.xpose.msra.mxu0 %v1429
    %1521 = vmatpush.xpose.msra.mxu0 %v1426
    %1522 = vmatpush.xpose.msra.mxu0 %v1423
    %1523 = vmatpush.xpose.msra.mxu0 %v1420
    %1524 = vmatpush.xpose.msra.mxu0 %v1417
    %1525 = vmatpush.xpose.msra.mxu0 %v1414
    %1526 = vmatpush.xpose.msra.mxu0 %v1411
    %1527 = vmatpush.xpose.msra.mxu0 %v1408
    %1528 = vmatpush.xpose.msra.mxu0 %v1405
    %1529 = vmatpush.xpose.msra.mxu0 %v1402
    %1530 = vmatmul.f32.gmra.mxu0 %v1207
    %v1531 = vpop.f32.mrf.mxu0
    %v1532 = vadd.f32 %v1205, %v1531
    %1533 = vdwg.mxu0
    %v1539 = vrot.slane %v1472, 7
    %v1540 = vrot.slane %v1492, 6
    %v1541 = vrot.slane %v1512, 5
    %v1542 = vrot.slane %v1532, 4
    %vm1543 = vcmask 1040384
    %v1544 = vsel %vm1543, %v1452, %v1539
    %vm1545 = vcmask 1041408
    %v1546 = vsel %vm1545, %v1544, %v1540
    %vm1547 = vcmask 1043459
    %v1548 = vsel %vm1547, %v1541, %v1542
    %vm1549 = vcmask 1042432
    %v1550 = vsel %vm1549, %v1546, %v1548
    %v1552 = vlaneseq
    %vm1553 = vcmp.ge.s32.totalorder %v1552, 0
    %vm1554 = vcmp.lt.s32.totalorder %v1552, 600
    %vm1555 = vmand %vm1553, %vm1554
    %1556 = vst.msk [vmem:[#allocation3] sm:$0x1f] %vm1555, %v1550
    // Predicated region
    $region30: #{_lambda_.1} parent=1 // pred_check
      _
    $region31: #{_lambda_.1} parent=1 // pred_check_branch
      %1558 = sbr.rel (0) target = $region33
    $region32: #{_lambda_.1} parent=1 // pred_region
      %1560 = vsyncadd [#allocation4], 0
      %s1562 = sshll.u32 [#allocation3], 4
      %s1563 = int_to_ptr.vmem [resolvable:$true] %s1562
      %s1564 = sshll.u32 %s7, 4
      %s1565 = int_to_ptr.hbm [resolvable:$true] %s1564
      %1567 = dma.vmem_to_hbm [thread:$0]  %s1563, 80, %s1565, [#allocation4]
    $region33: #{_lambda_.1} parent=1 // pred_fallthru
      _
    // Predicated region
    $region34: #{_lambda_.1} parent=1 // pred_check
      _
    $region35: #{_lambda_.1} parent=1 // pred_check_branch
      %1569 = sbr.rel (0) target = $region37
    $region36: #{_lambda_.1} parent=1 // pred_region
      %1571 = dma.done [#allocation4], 80
    $region37: #{_lambda_.1} parent=1 // pred_fallthru
      _
    %1572 = vsyncpa [#allocation4], 1

</llo_original>
